<compile_context>
chip_gen: v7x
topology: tpu7x:2x2x1
jax: 0.10.0
libtpu: 0.0.40
codegen_flags: <defaults>
</compile_context>

<pallas_src>
import functools

import jax
import jax.numpy as jnp
from jax.experimental import pallas as pl
from jax.experimental.pallas import tpu as pltpu


def _round_up(x, m):
    return (x + m - 1) // m * m


def _wordkvmn_kernel(h_ref, a_ref, lbl_ref, m_ref, tbl_ref, o_ref, *, n_labels):
    # h_ref:   (1, tS, Hp)  hidden_state tile (original dtype)
    # a_ref:   (1, Hp, W)   gathered, pre-scaled, pre-transposed word embeddings
    # lbl_ref: (1, tS, W)   integer label ids (index into emb_c table)
    # m_ref:   (1, tS, W)   word mask (original dtype)
    # tbl_ref: (Lp, Hp)     emb_c table (f32, tiny, VMEM resident)
    # o_ref:   (1, tS, Hp)  output tile (f32)
    f32 = jnp.float32
    h = h_ref[0].astype(f32)                     # (tS, Hp); 1/sqrt(H) folded into a
    a = a_ref[0].astype(f32)                     # (Hp, W)
    labels = lbl_ref[0]                          # (tS, W)
    mask = jnp.clip(m_ref[0].astype(f32), 0.0, 1.0)

    # u[s, w] = <h[s, :], a[:, w]>  -- canonical (tS,Hp)@(Hp,W) MXU matmul.
    u = jnp.dot(h, a, preferred_element_type=f32)            # (tS, W)
    delta = jnp.exp(u) * mask                                # un-normalized p

    # Bucket the W reduction by label value:
    #   w_mat[s, l] = sum_w delta[s, w] * [labels[s, w] == l]
    ts = h.shape[0]
    lp = tbl_ref.shape[0]
    col_ids = jax.lax.broadcasted_iota(jnp.int32, (1, lp), 1)
    w_mat = jnp.zeros((ts, lp), f32)
    for l in range(n_labels):
        w_l = jnp.sum(jnp.where(labels == l, delta, 0.0),
                      axis=1, keepdims=True)                 # (tS, 1)
        w_mat = jnp.where(col_ids == l, w_l, w_mat)          # place column l

    # Every delta element lands in exactly one bucket, so the row-sum of w_mat
    # over its (<=16) columns equals sum_W delta.  Much cheaper than a second
    # full (tS, W) lane reduction.
    denom = jnp.sum(w_mat, axis=1, keepdims=True) + 1e-10    # (tS, 1)

    # One MXU matmul replaces n_labels broadcast-FMA passes over (tS, Hp).
    acc = jnp.dot(w_mat, tbl_ref[...], preferred_element_type=f32)   # (tS, Hp)

    inv_denom = pl.reciprocal(denom, approx=False)           # exact, (tS, 1)
    o_ref[0] = (acc * inv_denom).astype(o_ref.dtype)


def wordkvmn_pallas(word_seq, hidden_state, label_value_matrix,
                    word_mask_metrix, emb_a_table, emb_c_table, *,
                    s_tile=512):
    """Pallas implementation of WordKVMN.forward."""
    B, S, H = hidden_state.shape
    W = word_seq.shape[1]
    L = emb_c_table.shape[0]
    inv_temper = 1.0 / (float(H) ** 0.5)    # temper uses the ORIGINAL hidden size

    f32 = jnp.float32
    Hp = _round_up(H, 128)                  # lane-dense output / MXU alignment
    Lp = _round_up(L, 8)                    # sublane-aligned contraction dim

    # --- choose the S tile so double-buffered blocks stay well under VMEM ----
    h_item = hidden_state.dtype.itemsize
    lbl_item = label_value_matrix.dtype.itemsize
    m_item = word_mask_metrix.dtype.itemsize

    def vmem_estimate(ts):
        return 2 * (ts * Hp * (h_item + 4)            # hidden in + f32 out
                    + ts * W * (lbl_item + m_item)    # label ids + mask
                    + Hp * W * 4                      # per-batch emb_a (const over s)
                    + Lp * Hp * 4)                    # emb_c table

    tS = min(s_tile, _round_up(S, 8))
    tS = max(8, (tS // 8) * 8)
    budget = 24 * 1024 * 1024               # headroom vs v7x's 64 MiB physical VMEM
    while vmem_estimate(tS) > budget and tS > 8:
        tS = max(8, (tS // 2) // 8 * 8)
    Sp = _round_up(S, tS)
    # v7x has two TensorCores: prefer a grid with >= 2 programs when possible.
    if B * (Sp // tS) < 2 and tS > 8:
        tS = max(8, _round_up((S + 1) // 2, 8))
        Sp = _round_up(S, tS)

    # --- wrapper glue: gather stays in JAX; no W padding; pad only if needed --
    # Fold 1/temper once into the small gathered table and pre-transpose so the
    # kernel matmul is canonical (loop-invariant hoist, done once per call).
    emb_a = jnp.take(emb_a_table, word_seq, axis=0).astype(f32) * inv_temper  # (B,W,H)
    emb_a_t = jnp.transpose(emb_a, (0, 2, 1))                                 # (B,H,W)
    if Hp != H:
        emb_a_t = jnp.pad(emb_a_t, ((0, 0), (0, Hp - H), (0, 0)))

    h = hidden_state
    if Sp != S or Hp != H:
        # Zero padding keeps padded rows/cols exactly zero-contributing.
        h = jnp.pad(h, ((0, 0), (0, Sp - S), (0, Hp - H)))
    labels = label_value_matrix
    mask = word_mask_metrix
    if Sp != S:
        labels = jnp.pad(labels, ((0, 0), (0, Sp - S), (0, 0)))
        mask = jnp.pad(mask, ((0, 0), (0, Sp - S), (0, 0)))

    tbl = emb_c_table.astype(f32)
    if Lp != L or Hp != H:
        tbl = jnp.pad(tbl, ((0, Lp - L), (0, Hp - H)))

    kernel = functools.partial(_wordkvmn_kernel, n_labels=L)

    out = pl.pallas_call(
        kernel,
        out_shape=jax.ShapeDtypeStruct((B, Sp, Hp), f32),
        grid_spec=pltpu.PrefetchScalarGridSpec(
            num_scalar_prefetch=0,
            grid=(B, Sp // tS),
            in_specs=[
                pl.BlockSpec((1, tS, Hp), lambda b, s: (b, s, 0)),  # hidden
                pl.BlockSpec((1, Hp, W), lambda b, s: (b, 0, 0)),   # emb_a^T (per batch)
                pl.BlockSpec((1, tS, W), lambda b, s: (b, s, 0)),   # label ids
                pl.BlockSpec((1, tS, W), lambda b, s: (b, s, 0)),   # mask
                pl.BlockSpec((Lp, Hp), lambda b, s: (0, 0)),        # emb_c table
            ],
            out_specs=pl.BlockSpec((1, tS, Hp), lambda b, s: (b, s, 0)),
        ),
        compiler_params=pltpu.CompilerParams(
            dimension_semantics=("parallel", "parallel"),
            vmem_limit_bytes=int(min(max(2 * vmem_estimate(tS),
                                         32 * 1024 * 1024),
                                     48 * 1024 * 1024)),
        ),
    )(h, emb_a_t, labels, mask, tbl)

    if Sp != S or Hp != H:
        out = out[:, :S, :H]
    return out.astype(hidden_state.dtype)


def wordkvmn_ref(word_seq, hidden_state, label_value_matrix, word_mask_metrix,
                 emb_a_table, emb_c_table):
    """Pure-JAX reference mirroring the PyTorch code line by line."""
    H = hidden_state.shape[-1]
    temper = float(H) ** 0.5
    embedding_a = jnp.take(emb_a_table, word_seq, axis=0)            # (B, W, H)
    embedding_c = jnp.take(emb_c_table, label_value_matrix, axis=0)  # (B, S, W, H)
    embedding_a = jnp.transpose(embedding_a, (0, 2, 1))              # (B, H, W)
    u = jnp.matmul(hidden_state, embedding_a) / temper               # (B, S, W)
    tmp_mask = jnp.clip(word_mask_metrix, 0, 1)
    exp_u = jnp.exp(u)
    delta_exp_u = exp_u * tmp_mask
    sum_delta = jnp.sum(delta_exp_u, axis=2, keepdims=True)
    p = delta_exp_u / (sum_delta + 1e-10)                            # (B, S, W)
    o = p[..., None] * embedding_c                                   # (B, S, W, H)
    o = jnp.sum(o, axis=2)                                           # (B, S, H)
    return o


if __name__ == "__main__":
    # Small deterministic shapes (exercise the padding path: H=32<128, S tile,
    # un-padded W=16).
    B, S, W, H = 2, 8, 16, 32
    word_size = 50
    n_labels = 10

    key = jax.random.PRNGKey(0)
    k1, k2, k3, k4, k5, k6 = jax.random.split(key, 6)

    # Deterministic "parameters" (embedding tables, as in nn.Embedding init).
    emb_a_table = jax.random.normal(k1, (word_size, H), dtype=jnp.float32)
    emb_c_table = jax.random.normal(k2, (n_labels, H), dtype=jnp.float32)

    # Inputs.
    word_seq = jax.random.randint(k3, (B, W), 0, word_size, dtype=jnp.int32)
    hidden_state = jax.random.normal(k4, (B, S, H), dtype=jnp.float32)
    label_value_matrix = jax.random.randint(k5, (B, S, W), 0, n_labels,
                                            dtype=jnp.int32)
    # Values in [0, 2) so the clamp to [0, 1] is exercised.
    word_mask_metrix = jax.random.uniform(k6, (B, S, W), minval=0.0, maxval=2.0,
                                          dtype=jnp.float32)

    out = wordkvmn_pallas(word_seq, hidden_state, label_value_matrix,
                          word_mask_metrix, emb_a_table, emb_c_table)
    out = jax.block_until_ready(out)

    ref = wordkvmn_ref(word_seq, hidden_state, label_value_matrix,
                       word_mask_metrix, emb_a_table, emb_c_table)

    assert out.shape == (B, S, H)
    assert jnp.allclose(out, ref, atol=2e-5, rtol=2e-5), "mismatch vs reference"
    print("KERNEL_OK")
</pallas_src>

<mosaic_0001>
module attributes {stable_mosaic.version = 11 : i64} {
  func.func @_wordkvmn_kernel(%arg0: i32, %arg1: i32, %arg2: memref<1x8x128xf32, #tpu.memory_space<vmem>>, %arg3: memref<1x128x16xf32, #tpu.memory_space<vmem>>, %arg4: memref<1x8x16xi32, #tpu.memory_space<vmem>>, %arg5: memref<1x8x16xf32, #tpu.memory_space<vmem>>, %arg6: memref<16x128xf32, #tpu.memory_space<vmem>>, %arg7: memref<1x8x128xf32, #tpu.memory_space<vmem>>) attributes {dimension_semantics = [#tpu.dimension_semantics<parallel>, #tpu.dimension_semantics<parallel>], iteration_bounds = array<i64: 2, 1>, scalar_prefetch = 0 : i64, scratch_operands = 0 : i64, tpu.core_type = #tpu.core_type<tc>, window_params = [{transform_indices = @transform_0, window_bounds = array<i64: 1, 8, 128>}, {transform_indices = @transform_1, window_bounds = array<i64: 1, 128, 16>}, {transform_indices = @transform_2, window_bounds = array<i64: 1, 8, 16>}, {transform_indices = @transform_3, window_bounds = array<i64: 1, 8, 16>}, {pipeline_mode = #tpu.pipeline_mode<synchronous>, transform_indices = @transform_4, window_bounds = array<i64: 16, 128>}, {transform_indices = @transform_5, window_bounds = array<i64: 1, 8, 128>}]} {
    %c0 = arith.constant 0 : index
    %c0_0 = arith.constant 0 : index
    %c0_1 = arith.constant 0 : index
    %0 = vector.load %arg2[%c0, %c0_0, %c0_1] : memref<1x8x128xf32, #tpu.memory_space<vmem>>, vector<1x8x128xf32>
    %1 = vector.shape_cast %0 : vector<1x8x128xf32> to vector<8x128xf32>
    %c0_2 = arith.constant 0 : index
    %c0_3 = arith.constant 0 : index
    %c0_4 = arith.constant 0 : index
    %2 = vector.load %arg3[%c0_2, %c0_3, %c0_4] : memref<1x128x16xf32, #tpu.memory_space<vmem>>, vector<1x128x16xf32>
    %3 = vector.shape_cast %2 : vector<1x128x16xf32> to vector<128x16xf32>
    %c0_5 = arith.constant 0 : index
    %c0_6 = arith.constant 0 : index
    %c0_7 = arith.constant 0 : index
    %4 = vector.load %arg4[%c0_5, %c0_6, %c0_7] : memref<1x8x16xi32, #tpu.memory_space<vmem>>, vector<1x8x16xi32>
    %5 = vector.shape_cast %4 : vector<1x8x16xi32> to vector<8x16xi32>
    %c0_8 = arith.constant 0 : index
    %c0_9 = arith.constant 0 : index
    %c0_10 = arith.constant 0 : index
    %6 = vector.load %arg5[%c0_8, %c0_9, %c0_10] : memref<1x8x16xf32, #tpu.memory_space<vmem>>, vector<1x8x16xf32>
    %7 = vector.shape_cast %6 : vector<1x8x16xf32> to vector<8x16xf32>
    %cst = arith.constant 0.000000e+00 : f32
    %cst_11 = arith.constant 1.000000e+00 : f32
    %8 = vector.broadcast %cst : f32 to vector<8x16xf32>
    %9 = arith.maximumf %8, %7 : vector<8x16xf32>
    %10 = vector.broadcast %cst_11 : f32 to vector<8x16xf32>
    %11 = arith.minimumf %10, %9 : vector<8x16xf32>
    %cst_12 = arith.constant dense<0.000000e+00> : vector<8x16xf32>
    %12 = tpu.matmul %1, %3, %cst_12 {dimension_numbers = #tpu.dot_dimension_numbers<[1], [0], [0], [1], [0, 0, 1, 1], [], []>} : vector<8x128xf32>, vector<128x16xf32>, vector<8x16xf32> -> vector<8x16xf32>
    %13 = math.exp %12 : vector<8x16xf32>
    %14 = arith.mulf %13, %11 : vector<8x16xf32>
    %15 = tpu.iota {dimensions = array<i32: 1>} : vector<1x16xi32>
    %cst_13 = arith.constant 0.000000e+00 : f32
    %16 = vector.broadcast %cst_13 : f32 to vector<8x16xf32>
    %c0_i32 = arith.constant 0 : i32
    %17 = vector.broadcast %c0_i32 : i32 to vector<8x16xi32>
    %18 = arith.cmpi eq, %5, %17 : vector<8x16xi32>
    %cst_14 = arith.constant 0.000000e+00 : f32
    %19 = vector.broadcast %cst_14 : f32 to vector<8x16xf32>
    %20 = arith.select %18, %14, %19 : vector<8x16xi1>, vector<8x16xf32>
    %cst_15 = arith.constant dense<0.000000e+00> : vector<8xf32>
    %21 = vector.multi_reduction <add>, %20, %cst_15 [1] : vector<8x16xf32> to vector<8xf32>
    %22 = vector.shape_cast %21 : vector<8xf32> to vector<8x1xf32>
    %c0_i32_16 = arith.constant 0 : i32
    %23 = vector.broadcast %c0_i32_16 : i32 to vector<1x16xi32>
    %24 = arith.cmpi eq, %15, %23 : vector<1x16xi32>
    %25 = vector.shape_cast %24 : vector<1x16xi1> to vector<1x16xi1>
    %26 = vector.broadcast %25 : vector<1x16xi1> to vector<8x16xi1>
    %27 = vector.shape_cast %22 : vector<8x1xf32> to vector<8x1xf32>
    %28 = vector.broadcast %27 : vector<8x1xf32> to vector<8x16xf32>
    %29 = arith.select %26, %28, %16 : vector<8x16xi1>, vector<8x16xf32>
    %c1_i32 = arith.constant 1 : i32
    %30 = vector.broadcast %c1_i32 : i32 to vector<8x16xi32>
    %31 = arith.cmpi eq, %5, %30 : vector<8x16xi32>
    %cst_17 = arith.constant 0.000000e+00 : f32
    %32 = vector.broadcast %cst_17 : f32 to vector<8x16xf32>
    %33 = arith.select %31, %14, %32 : vector<8x16xi1>, vector<8x16xf32>
    %cst_18 = arith.constant dense<0.000000e+00> : vector<8xf32>
    %34 = vector.multi_reduction <add>, %33, %cst_18 [1] : vector<8x16xf32> to vector<8xf32>
    %35 = vector.shape_cast %34 : vector<8xf32> to vector<8x1xf32>
    %c1_i32_19 = arith.constant 1 : i32
    %36 = vector.broadcast %c1_i32_19 : i32 to vector<1x16xi32>
    %37 = arith.cmpi eq, %15, %36 : vector<1x16xi32>
    %38 = vector.shape_cast %37 : vector<1x16xi1> to vector<1x16xi1>
    %39 = vector.broadcast %38 : vector<1x16xi1> to vector<8x16xi1>
    %40 = vector.shape_cast %35 : vector<8x1xf32> to vector<8x1xf32>
    %41 = vector.broadcast %40 : vector<8x1xf32> to vector<8x16xf32>
    %42 = arith.select %39, %41, %29 : vector<8x16xi1>, vector<8x16xf32>
    %c2_i32 = arith.constant 2 : i32
    %43 = vector.broadcast %c2_i32 : i32 to vector<8x16xi32>
    %44 = arith.cmpi eq, %5, %43 : vector<8x16xi32>
    %cst_20 = arith.constant 0.000000e+00 : f32
    %45 = vector.broadcast %cst_20 : f32 to vector<8x16xf32>
    %46 = arith.select %44, %14, %45 : vector<8x16xi1>, vector<8x16xf32>
    %cst_21 = arith.constant dense<0.000000e+00> : vector<8xf32>
    %47 = vector.multi_reduction <add>, %46, %cst_21 [1] : vector<8x16xf32> to vector<8xf32>
    %48 = vector.shape_cast %47 : vector<8xf32> to vector<8x1xf32>
    %c2_i32_22 = arith.constant 2 : i32
    %49 = vector.broadcast %c2_i32_22 : i32 to vector<1x16xi32>
    %50 = arith.cmpi eq, %15, %49 : vector<1x16xi32>
    %51 = vector.shape_cast %50 : vector<1x16xi1> to vector<1x16xi1>
    %52 = vector.broadcast %51 : vector<1x16xi1> to vector<8x16xi1>
    %53 = vector.shape_cast %48 : vector<8x1xf32> to vector<8x1xf32>
    %54 = vector.broadcast %53 : vector<8x1xf32> to vector<8x16xf32>
    %55 = arith.select %52, %54, %42 : vector<8x16xi1>, vector<8x16xf32>
    %c3_i32 = arith.constant 3 : i32
    %56 = vector.broadcast %c3_i32 : i32 to vector<8x16xi32>
    %57 = arith.cmpi eq, %5, %56 : vector<8x16xi32>
    %cst_23 = arith.constant 0.000000e+00 : f32
    %58 = vector.broadcast %cst_23 : f32 to vector<8x16xf32>
    %59 = arith.select %57, %14, %58 : vector<8x16xi1>, vector<8x16xf32>
    %cst_24 = arith.constant dense<0.000000e+00> : vector<8xf32>
    %60 = vector.multi_reduction <add>, %59, %cst_24 [1] : vector<8x16xf32> to vector<8xf32>
    %61 = vector.shape_cast %60 : vector<8xf32> to vector<8x1xf32>
    %c3_i32_25 = arith.constant 3 : i32
    %62 = vector.broadcast %c3_i32_25 : i32 to vector<1x16xi32>
    %63 = arith.cmpi eq, %15, %62 : vector<1x16xi32>
    %64 = vector.shape_cast %63 : vector<1x16xi1> to vector<1x16xi1>
    %65 = vector.broadcast %64 : vector<1x16xi1> to vector<8x16xi1>
    %66 = vector.shape_cast %61 : vector<8x1xf32> to vector<8x1xf32>
    %67 = vector.broadcast %66 : vector<8x1xf32> to vector<8x16xf32>
    %68 = arith.select %65, %67, %55 : vector<8x16xi1>, vector<8x16xf32>
    %c4_i32 = arith.constant 4 : i32
    %69 = vector.broadcast %c4_i32 : i32 to vector<8x16xi32>
    %70 = arith.cmpi eq, %5, %69 : vector<8x16xi32>
    %cst_26 = arith.constant 0.000000e+00 : f32
    %71 = vector.broadcast %cst_26 : f32 to vector<8x16xf32>
    %72 = arith.select %70, %14, %71 : vector<8x16xi1>, vector<8x16xf32>
    %cst_27 = arith.constant dense<0.000000e+00> : vector<8xf32>
    %73 = vector.multi_reduction <add>, %72, %cst_27 [1] : vector<8x16xf32> to vector<8xf32>
    %74 = vector.shape_cast %73 : vector<8xf32> to vector<8x1xf32>
    %c4_i32_28 = arith.constant 4 : i32
    %75 = vector.broadcast %c4_i32_28 : i32 to vector<1x16xi32>
    %76 = arith.cmpi eq, %15, %75 : vector<1x16xi32>
    %77 = vector.shape_cast %76 : vector<1x16xi1> to vector<1x16xi1>
    %78 = vector.broadcast %77 : vector<1x16xi1> to vector<8x16xi1>
    %79 = vector.shape_cast %74 : vector<8x1xf32> to vector<8x1xf32>
    %80 = vector.broadcast %79 : vector<8x1xf32> to vector<8x16xf32>
    %81 = arith.select %78, %80, %68 : vector<8x16xi1>, vector<8x16xf32>
    %c5_i32 = arith.constant 5 : i32
    %82 = vector.broadcast %c5_i32 : i32 to vector<8x16xi32>
    %83 = arith.cmpi eq, %5, %82 : vector<8x16xi32>
    %cst_29 = arith.constant 0.000000e+00 : f32
    %84 = vector.broadcast %cst_29 : f32 to vector<8x16xf32>
    %85 = arith.select %83, %14, %84 : vector<8x16xi1>, vector<8x16xf32>
    %cst_30 = arith.constant dense<0.000000e+00> : vector<8xf32>
    %86 = vector.multi_reduction <add>, %85, %cst_30 [1] : vector<8x16xf32> to vector<8xf32>
    %87 = vector.shape_cast %86 : vector<8xf32> to vector<8x1xf32>
    %c5_i32_31 = arith.constant 5 : i32
    %88 = vector.broadcast %c5_i32_31 : i32 to vector<1x16xi32>
    %89 = arith.cmpi eq, %15, %88 : vector<1x16xi32>
    %90 = vector.shape_cast %89 : vector<1x16xi1> to vector<1x16xi1>
    %91 = vector.broadcast %90 : vector<1x16xi1> to vector<8x16xi1>
    %92 = vector.shape_cast %87 : vector<8x1xf32> to vector<8x1xf32>
    %93 = vector.broadcast %92 : vector<8x1xf32> to vector<8x16xf32>
    %94 = arith.select %91, %93, %81 : vector<8x16xi1>, vector<8x16xf32>
    %c6_i32 = arith.constant 6 : i32
    %95 = vector.broadcast %c6_i32 : i32 to vector<8x16xi32>
    %96 = arith.cmpi eq, %5, %95 : vector<8x16xi32>
    %cst_32 = arith.constant 0.000000e+00 : f32
    %97 = vector.broadcast %cst_32 : f32 to vector<8x16xf32>
    %98 = arith.select %96, %14, %97 : vector<8x16xi1>, vector<8x16xf32>
    %cst_33 = arith.constant dense<0.000000e+00> : vector<8xf32>
    %99 = vector.multi_reduction <add>, %98, %cst_33 [1] : vector<8x16xf32> to vector<8xf32>
    %100 = vector.shape_cast %99 : vector<8xf32> to vector<8x1xf32>
    %c6_i32_34 = arith.constant 6 : i32
    %101 = vector.broadcast %c6_i32_34 : i32 to vector<1x16xi32>
    %102 = arith.cmpi eq, %15, %101 : vector<1x16xi32>
    %103 = vector.shape_cast %102 : vector<1x16xi1> to vector<1x16xi1>
    %104 = vector.broadcast %103 : vector<1x16xi1> to vector<8x16xi1>
    %105 = vector.shape_cast %100 : vector<8x1xf32> to vector<8x1xf32>
    %106 = vector.broadcast %105 : vector<8x1xf32> to vector<8x16xf32>
    %107 = arith.select %104, %106, %94 : vector<8x16xi1>, vector<8x16xf32>
    %c7_i32 = arith.constant 7 : i32
    %108 = vector.broadcast %c7_i32 : i32 to vector<8x16xi32>
    %109 = arith.cmpi eq, %5, %108 : vector<8x16xi32>
    %cst_35 = arith.constant 0.000000e+00 : f32
    %110 = vector.broadcast %cst_35 : f32 to vector<8x16xf32>
    %111 = arith.select %109, %14, %110 : vector<8x16xi1>, vector<8x16xf32>
    %cst_36 = arith.constant dense<0.000000e+00> : vector<8xf32>
    %112 = vector.multi_reduction <add>, %111, %cst_36 [1] : vector<8x16xf32> to vector<8xf32>
    %113 = vector.shape_cast %112 : vector<8xf32> to vector<8x1xf32>
    %c7_i32_37 = arith.constant 7 : i32
    %114 = vector.broadcast %c7_i32_37 : i32 to vector<1x16xi32>
    %115 = arith.cmpi eq, %15, %114 : vector<1x16xi32>
    %116 = vector.shape_cast %115 : vector<1x16xi1> to vector<1x16xi1>
    %117 = vector.broadcast %116 : vector<1x16xi1> to vector<8x16xi1>
    %118 = vector.shape_cast %113 : vector<8x1xf32> to vector<8x1xf32>
    %119 = vector.broadcast %118 : vector<8x1xf32> to vector<8x16xf32>
    %120 = arith.select %117, %119, %107 : vector<8x16xi1>, vector<8x16xf32>
    %c8_i32 = arith.constant 8 : i32
    %121 = vector.broadcast %c8_i32 : i32 to vector<8x16xi32>
    %122 = arith.cmpi eq, %5, %121 : vector<8x16xi32>
    %cst_38 = arith.constant 0.000000e+00 : f32
    %123 = vector.broadcast %cst_38 : f32 to vector<8x16xf32>
    %124 = arith.select %122, %14, %123 : vector<8x16xi1>, vector<8x16xf32>
    %cst_39 = arith.constant dense<0.000000e+00> : vector<8xf32>
    %125 = vector.multi_reduction <add>, %124, %cst_39 [1] : vector<8x16xf32> to vector<8xf32>
    %126 = vector.shape_cast %125 : vector<8xf32> to vector<8x1xf32>
    %c8_i32_40 = arith.constant 8 : i32
    %127 = vector.broadcast %c8_i32_40 : i32 to vector<1x16xi32>
    %128 = arith.cmpi eq, %15, %127 : vector<1x16xi32>
    %129 = vector.shape_cast %128 : vector<1x16xi1> to vector<1x16xi1>
    %130 = vector.broadcast %129 : vector<1x16xi1> to vector<8x16xi1>
    %131 = vector.shape_cast %126 : vector<8x1xf32> to vector<8x1xf32>
    %132 = vector.broadcast %131 : vector<8x1xf32> to vector<8x16xf32>
    %133 = arith.select %130, %132, %120 : vector<8x16xi1>, vector<8x16xf32>
    %c9_i32 = arith.constant 9 : i32
    %134 = vector.broadcast %c9_i32 : i32 to vector<8x16xi32>
    %135 = arith.cmpi eq, %5, %134 : vector<8x16xi32>
    %cst_41 = arith.constant 0.000000e+00 : f32
    %136 = vector.broadcast %cst_41 : f32 to vector<8x16xf32>
    %137 = arith.select %135, %14, %136 : vector<8x16xi1>, vector<8x16xf32>
    %cst_42 = arith.constant dense<0.000000e+00> : vector<8xf32>
    %138 = vector.multi_reduction <add>, %137, %cst_42 [1] : vector<8x16xf32> to vector<8xf32>
    %139 = vector.shape_cast %138 : vector<8xf32> to vector<8x1xf32>
    %c9_i32_43 = arith.constant 9 : i32
    %140 = vector.broadcast %c9_i32_43 : i32 to vector<1x16xi32>
    %141 = arith.cmpi eq, %15, %140 : vector<1x16xi32>
    %142 = vector.shape_cast %141 : vector<1x16xi1> to vector<1x16xi1>
    %143 = vector.broadcast %142 : vector<1x16xi1> to vector<8x16xi1>
    %144 = vector.shape_cast %139 : vector<8x1xf32> to vector<8x1xf32>
    %145 = vector.broadcast %144 : vector<8x1xf32> to vector<8x16xf32>
    %146 = arith.select %143, %145, %133 : vector<8x16xi1>, vector<8x16xf32>
    %cst_44 = arith.constant dense<0.000000e+00> : vector<8xf32>
    %147 = vector.multi_reduction <add>, %146, %cst_44 [1] : vector<8x16xf32> to vector<8xf32>
    %148 = vector.shape_cast %147 : vector<8xf32> to vector<8x1xf32>
    %cst_45 = arith.constant 1.000000e-10 : f32
    %149 = vector.broadcast %cst_45 : f32 to vector<8x1xf32>
    %150 = arith.addf %148, %149 : vector<8x1xf32>
    %c0_46 = arith.constant 0 : index
    %c0_47 = arith.constant 0 : index
    %151 = vector.load %arg6[%c0_46, %c0_47] : memref<16x128xf32, #tpu.memory_space<vmem>>, vector<16x128xf32>
    %cst_48 = arith.constant dense<0.000000e+00> : vector<8x128xf32>
    %152 = tpu.matmul %146, %151, %cst_48 {dimension_numbers = #tpu.dot_dimension_numbers<[1], [0], [0], [1], [0, 0, 1, 1], [], []>} : vector<8x16xf32>, vector<16x128xf32>, vector<8x128xf32> -> vector<8x128xf32>
    %153 = tpu.reciprocal %150 : vector<8x1xf32> -> vector<8x1xf32>
    %154 = vector.broadcast %153 : vector<8x1xf32> to vector<8x128xf32>
    %155 = arith.mulf %152, %154 : vector<8x128xf32>
    %c0_49 = arith.constant 0 : index
    %c0_50 = arith.constant 0 : index
    %c0_51 = arith.constant 0 : index
    %156 = vector.load %arg7[%c0_49, %c0_50, %c0_51] : memref<1x8x128xf32, #tpu.memory_space<vmem>>, vector<1x8x128xf32>
    %157 = vector.shape_cast %156 : vector<1x8x128xf32> to vector<8x128xf32>
    %158 = vector.shape_cast %155 : vector<8x128xf32> to vector<1x8x128xf32>
    tpu.vector_store %arg7[%c0_49, %c0_50, %c0_51], %158 {strides = array<i32>} : memref<1x8x128xf32, #tpu.memory_space<vmem>>, vector<1x8x128xf32>,
    return
  }
  func.func @transform_0(%arg0: i32, %arg1: i32) -> (i32, i32, i32) {
    %c0_i32 = arith.constant 0 : i32
    %c0_i32_0 = arith.constant 0 : i32
    return %arg0, %arg1, %c0_i32 : i32, i32, i32
  }
  func.func @transform_1(%arg0: i32, %arg1: i32) -> (i32, i32, i32) {
    %c0_i32 = arith.constant 0 : i32
    %c0_i32_0 = arith.constant 0 : i32
    %c0_i32_1 = arith.constant 0 : i32
    return %arg0, %c0_i32, %c0_i32_0 : i32, i32, i32
  }
  func.func @transform_2(%arg0: i32, %arg1: i32) -> (i32, i32, i32) {
    %c0_i32 = arith.constant 0 : i32
    %c0_i32_0 = arith.constant 0 : i32
    return %arg0, %arg1, %c0_i32 : i32, i32, i32
  }
  func.func @transform_3(%arg0: i32, %arg1: i32) -> (i32, i32, i32) {
    %c0_i32 = arith.constant 0 : i32
    %c0_i32_0 = arith.constant 0 : i32
    return %arg0, %arg1, %c0_i32 : i32, i32, i32
  }
  func.func @transform_4(%arg0: i32, %arg1: i32) -> (i32, i32) {
    %c0_i32 = arith.constant 0 : i32
    %c0_i32_0 = arith.constant 0 : i32
    %c0_i32_1 = arith.constant 0 : i32
    return %c0_i32, %c0_i32_0 : i32, i32
  }
  func.func @transform_5(%arg0: i32, %arg1: i32) -> (i32, i32, i32) {
    %c0_i32 = arith.constant 0 : i32
    %c0_i32_0 = arith.constant 0 : i32
    return %arg0, %arg1, %c0_i32 : i32, i32, i32
  }
}

</mosaic_0001>

<llo_original>
// kernel: tpu_custom_call.1
$region0: #{tpu_custom_call.1}
  #allocation0 [shape = 'u32[]', space=smem, size = 0x4, offset = 0x4, fixed_abs, tag = 'smem constant byte address 0x4 - core index']
  #allocation1 [shape = 'u32[144,128]{1,0:T(1,128)}', space=vmem, size = 0x12000, scoped, tag = 'internal scratch']
  %s0 = inlined_call_operand.vmem [shape: f32[2,8,128], index: 0, kind: input, shape index: {}]
  %s1 = inlined_call_operand.vmem [shape: f32[2,128,16], index: 1, kind: input, shape index: {}]
  %s2 = inlined_call_operand.vmem [shape: s32[2,8,16], index: 2, kind: input, shape index: {}]
  %s3 = inlined_call_operand.vmem [shape: f32[2,8,16], index: 3, kind: input, shape index: {}]
  %s4 = inlined_call_operand.vmem [shape: f32[16,128], index: 4, kind: input, shape index: {}]
  %s5 = inlined_call_operand.hbm [shape: f32[2,8,128], index: 5, kind: output, shape index: {}]
  %s6 = sld [smem:[#allocation0]]
  $region53: #{tpu_custom_call.1} parent=0
    _
  %s8 = ssub.s32 1, %s6
  %s9 = scalar_select 0, %s8, %s6
  $region1: #{tpu_custom_call.1} parent=0
    #allocation2 [shape = 'u8[8192]{0}', space=vmem, size = 0x2000, scoped, tag = 'output window, operand 0']
    #allocation3 [shape = 's32[2]{0}', space=sflag, size = 0x8, scoped, tag = 'scoped memory for tpu_custom_call.1']
    %10 = vsyncpa [#allocation3], 0
    %s11 = scalar_lea.sflag [#allocation3], 1
    %12 = vsyncpa %s11, 0
    loop: start=0, step=1, limit=4
    $region2: #{tpu_custom_call.1} parent=1 // loop_pre_header
      _
    $region3: #{tpu_custom_call.1} parent=1 // loop_header
      %s14 = sphi 0, %s18
      %p15 = scmp.ge.s32.totalorder %s14, 4
      %s21 = sphi 0, %s33
      %s22 = sphi 0, %s29
      %s23 = sphi 0, %s21
      %s24 = sphi 0, %s22
      %s25 = sphi 0, %s23
      %s26 = sphi 0, %s24
      %s38 = sphi 0, %s40
      %s41 = sphi 0, %s38
      %s42 = sphi 0, %s41
      %s58 = sphi 0, %s42
      %s64 = sphi 0, %s66
      %s67 = sphi 0, %s64
      %s68 = sphi 0, %s67
      %s84 = sphi 0, %s68
      %s92 = sphi 0, %s94
      %s95 = sphi 0, %s92
      %s96 = sphi 0, %s95
      %s112 = sphi 0, %s96
      %s120 = sphi 0, %s122
      %s123 = sphi 0, %s120
      %s124 = sphi 0, %s123
      %s140 = sphi 0, %s124
      %s144 = sphi 0, %s144
      %s146 = sphi 0, %s144
      %s147 = sphi 0, %s146
      %s161 = sphi 0, %s147
      %s169 = sphi 0, %s171
      %s172 = sphi 0, %s169
      %s173 = sphi 0, %s172
      %s189 = sphi 0, %s173
    $region4: #{tpu_custom_call.1} parent=1 // loop_header_branch
      %17 = sbr.rel (%p15) target = $region8
    $region5: #{tpu_custom_call.1} parent=1 // loop_body
      %s19 = ssub.s32 %s14, 1
      %s20 = ssub.s32 %s14, 2
      %s27 = sadd.s32 1, %s22
      %p28 = scmp.ge.s32.totalorder %s27, 1
      %s29 = scalar_select %p28, 0, %s27
      %s30 = sadd.s32 1, %s21
      %s31 = scalar_select %p28, %s30, %s21
      %p32 = scmp.ge.s32.totalorder %s31, 2
      %s33 = scalar_select %p32, 0, %s31
      %s34 = ssub.s32 %s21, %s33
      %s35 = ssub.s32 %s22, %s29
      %s36 = sor.u32 %s34, %s35
      %p37 = scmp.eq.s32.totalorder %s36, 0
      %s39 = sadd.s32 %s38, 1
      %s40 = scalar_select %p37, %s38, %s39
      %p43 = pneg %p37
      %p44 = scmp.eq.s32.totalorder %s14, 1
      %p45 = por %p43, %p44
      %p46 = scmp.ne.s32.totalorder %s38, %s41
      %p47 = scmp.eq.s32.totalorder %s14, 0
      %p48 = por %p46, %p47
      %p49 = scmp.ne.s32.totalorder %s38, %s41
      %p50 = scmp.eq.s32.totalorder %s19, 1
      %p51 = por %p49, %p50
      %p52 = scmp.ne.s32.totalorder %s41, %s42
      %p53 = scmp.eq.s32.totalorder %s19, 0
      %p54 = por %p52, %p53
      %p55 = scmp.ne.s32.totalorder %s41, %s42
      %p56 = scmp.eq.s32.totalorder %s20, 1
      %p57 = por %p55, %p56
      %p59 = scmp.ne.s32.totalorder %s42, %s58
      %p60 = scmp.eq.s32.totalorder %s20, 0
      %p61 = por %p59, %p60
      %s62 = ssub.s32 %s21, %s33
      %p63 = scmp.eq.s32.totalorder %s62, 0
      %s65 = sadd.s32 %s64, 1
      %s66 = scalar_select %p63, %s64, %s65
      %p69 = pneg %p63
      %p70 = scmp.eq.s32.totalorder %s14, 1
      %p71 = por %p69, %p70
      %p72 = scmp.ne.s32.totalorder %s64, %s67
      %p73 = scmp.eq.s32.totalorder %s14, 0
      %p74 = por %p72, %p73
      %p75 = scmp.ne.s32.totalorder %s64, %s67
      %p76 = scmp.eq.s32.totalorder %s19, 1
      %p77 = por %p75, %p76
      %p78 = scmp.ne.s32.totalorder %s67, %s68
      %p79 = scmp.eq.s32.totalorder %s19, 0
      %p80 = por %p78, %p79
      %p81 = scmp.ne.s32.totalorder %s67, %s68
      %p82 = scmp.eq.s32.totalorder %s20, 1
      %p83 = por %p81, %p82
      %p85 = scmp.ne.s32.totalorder %s68, %s84
      %p86 = scmp.eq.s32.totalorder %s20, 0
      %p87 = por %p85, %p86
      %s88 = ssub.s32 %s21, %s33
      %s89 = ssub.s32 %s22, %s29
      %s90 = sor.u32 %s88, %s89
      %p91 = scmp.eq.s32.totalorder %s90, 0
      %s93 = sadd.s32 %s92, 1
      %s94 = scalar_select %p91, %s92, %s93
      %p97 = pneg %p91
      %p98 = scmp.eq.s32.totalorder %s14, 1
      %p99 = por %p97, %p98
      %p100 = scmp.ne.s32.totalorder %s92, %s95
      %p101 = scmp.eq.s32.totalorder %s14, 0
      %p102 = por %p100, %p101
      %p103 = scmp.ne.s32.totalorder %s92, %s95
      %p104 = scmp.eq.s32.totalorder %s19, 1
      %p105 = por %p103, %p104
      %p106 = scmp.ne.s32.totalorder %s95, %s96
      %p107 = scmp.eq.s32.totalorder %s19, 0
      %p108 = por %p106, %p107
      %p109 = scmp.ne.s32.totalorder %s95, %s96
      %p110 = scmp.eq.s32.totalorder %s20, 1
      %p111 = por %p109, %p110
      %p113 = scmp.ne.s32.totalorder %s96, %s112
      %p114 = scmp.eq.s32.totalorder %s20, 0
      %p115 = por %p113, %p114
      %s116 = ssub.s32 %s21, %s33
      %s117 = ssub.s32 %s22, %s29
      %s118 = sor.u32 %s116, %s117
      %p119 = scmp.eq.s32.totalorder %s118, 0
      %s121 = sadd.s32 %s120, 1
      %s122 = scalar_select %p119, %s120, %s121
      %p125 = pneg %p119
      %p126 = scmp.eq.s32.totalorder %s14, 1
      %p127 = por %p125, %p126
      %p128 = scmp.ne.s32.totalorder %s120, %s123
      %p129 = scmp.eq.s32.totalorder %s14, 0
      %p130 = por %p128, %p129
      %p131 = scmp.ne.s32.totalorder %s120, %s123
      %p132 = scmp.eq.s32.totalorder %s19, 1
      %p133 = por %p131, %p132
      %p134 = scmp.ne.s32.totalorder %s123, %s124
      %p135 = scmp.eq.s32.totalorder %s19, 0
      %p136 = por %p134, %p135
      %p137 = scmp.ne.s32.totalorder %s123, %s124
      %p138 = scmp.eq.s32.totalorder %s20, 1
      %p139 = por %p137, %p138
      %p141 = scmp.ne.s32.totalorder %s124, %s140
      %p142 = scmp.eq.s32.totalorder %s20, 0
      %p143 = por %p141, %p142
      %s145 = sadd.s32 %s144, 1
      %p148 = scmp.eq.s32.totalorder %s14, 1
      %p149 = scmp.ne.s32.totalorder %s144, %s146
      %p150 = scmp.eq.s32.totalorder %s14, 0
      %p151 = por %p149, %p150
      %p152 = scmp.ne.s32.totalorder %s144, %s146
      %p153 = scmp.eq.s32.totalorder %s19, 1
      %p154 = por %p152, %p153
      %p155 = scmp.ne.s32.totalorder %s146, %s147
      %p156 = scmp.eq.s32.totalorder %s19, 0
      %p157 = por %p155, %p156
      %p158 = scmp.ne.s32.totalorder %s146, %s147
      %p159 = scmp.eq.s32.totalorder %s20, 1
      %p160 = por %p158, %p159
      %p162 = scmp.ne.s32.totalorder %s147, %s161
      %p163 = scmp.eq.s32.totalorder %s20, 0
      %p164 = por %p162, %p163
      %s165 = ssub.s32 %s21, %s33
      %s166 = ssub.s32 %s22, %s29
      %s167 = sor.u32 %s165, %s166
      %p168 = scmp.eq.s32.totalorder %s167, 0
      %s170 = sadd.s32 %s169, 1
      %s171 = scalar_select %p168, %s169, %s170
      %p174 = pneg %p168
      %p175 = scmp.eq.s32.totalorder %s14, 1
      %p176 = por %p174, %p175
      %p177 = scmp.ne.s32.totalorder %s169, %s172
      %p178 = scmp.eq.s32.totalorder %s14, 0
      %p179 = por %p177, %p178
      %p180 = scmp.ne.s32.totalorder %s169, %s172
      %p181 = scmp.eq.s32.totalorder %s19, 1
      %p182 = por %p180, %p181
      %p183 = scmp.ne.s32.totalorder %s172, %s173
      %p184 = scmp.eq.s32.totalorder %s19, 0
      %p185 = por %p183, %p184
      %p186 = scmp.ne.s32.totalorder %s172, %s173
      %p187 = scmp.eq.s32.totalorder %s20, 1
      %p188 = por %p186, %p187
      %p190 = scmp.ne.s32.totalorder %s173, %s189
      %p191 = scmp.eq.s32.totalorder %s20, 0
      %p192 = por %p190, %p191
      %p193 = scmp.le.s32.totalorder 1, %s14
      %p194 = scmp.lt.s32.totalorder %s14, 3
      %p195 = pnand %p193, %p194
      %p196 = pneg %p195
      // Predicated region
      $region9: #{tpu_custom_call.1} parent=5 // pred_check
        _
      $region10: #{tpu_custom_call.1} parent=5 // pred_check_branch
        %198 = sbr.rel (%p195) target = $region12
      $region11: #{tpu_custom_call.1} parent=5 // pred_region
        %s199 = ssub.s32 %s14, 1
        // Predicated region
        $region13: #{tpu_custom_call.1} parent=11 // pred_check
          %p200 = pneg %p157
        $region14: #{tpu_custom_call.1} parent=11 // pred_check_branch
          %202 = sbr.rel (%p200) target = $region16
        $region15: #{tpu_custom_call.1} parent=11 // pred_region
          _
        $region16: #{tpu_custom_call.1} parent=11 // pred_fallthru
          _
      $region12: #{tpu_custom_call.1} parent=5 // pred_fallthru
        _
      %p203 = scmp.lt.s32.totalorder %s14, 2
      // Predicated region
      $region17: #{tpu_custom_call.1} parent=5 // pred_check
        %p204 = pneg %p203
      $region18: #{tpu_custom_call.1} parent=5 // pred_check_branch
        %206 = sbr.rel (%p204) target = $region20
      $region19: #{tpu_custom_call.1} parent=5 // pred_region
        // Predicated region
        $region21: #{tpu_custom_call.1} parent=19 // pred_check
          %p207 = pneg %p48
        $region22: #{tpu_custom_call.1} parent=19 // pred_check_branch
          %209 = sbr.rel (%p207) target = $region24
        $region23: #{tpu_custom_call.1} parent=19 // pred_region
          %p210 = scmp.lt.s32.totalorder %s21, 1
          %s211 = scalar_select %p210, %s21, 1
          %p212 = scmp.lt.s32.totalorder %s22, 0
          %s213 = scalar_select %p212, %s22, 0
          %s214 = sadd.s32 %s213, %s211
          %s215 = smul.addr %s214, 8
          %s216 = scalar_lea.vmem %s0, %s215
        $region24: #{tpu_custom_call.1} parent=19 // pred_fallthru
          _
        // Predicated region
        $region25: #{tpu_custom_call.1} parent=19 // pred_check
          %p217 = pneg %p74
        $region26: #{tpu_custom_call.1} parent=19 // pred_check_branch
          %219 = sbr.rel (%p217) target = $region28
        $region27: #{tpu_custom_call.1} parent=19 // pred_region
          %p220 = scmp.lt.s32.totalorder %s21, 1
          %s221 = scalar_select %p220, %s21, 1
          %s222 = smul.addr %s221, 16
          %s223 = smul.addr %s222, 8
          %s224 = scalar_lea.vmem %s1, %s223
        $region28: #{tpu_custom_call.1} parent=19 // pred_fallthru
          _
        // Predicated region
        $region29: #{tpu_custom_call.1} parent=19 // pred_check
          %p225 = pneg %p102
        $region30: #{tpu_custom_call.1} parent=19 // pred_check_branch
          %227 = sbr.rel (%p225) target = $region32
        $region31: #{tpu_custom_call.1} parent=19 // pred_region
          %p228 = scmp.lt.s32.totalorder %s21, 1
          %s229 = scalar_select %p228, %s21, 1
          %p230 = scmp.lt.s32.totalorder %s22, 0
          %s231 = scalar_select %p230, %s22, 0
          %s232 = sadd.s32 %s231, %s229
          %s233 = smul.addr %s232, 8
          %s234 = scalar_lea.vmem %s2, %s233
        $region32: #{tpu_custom_call.1} parent=19 // pred_fallthru
          _
        // Predicated region
        $region33: #{tpu_custom_call.1} parent=19 // pred_check
          %p235 = pneg %p130
        $region34: #{tpu_custom_call.1} parent=19 // pred_check_branch
          %237 = sbr.rel (%p235) target = $region36
        $region35: #{tpu_custom_call.1} parent=19 // pred_region
          %p238 = scmp.lt.s32.totalorder %s21, 1
          %s239 = scalar_select %p238, %s21, 1
          %p240 = scmp.lt.s32.totalorder %s22, 0
          %s241 = scalar_select %p240, %s22, 0
          %s242 = sadd.s32 %s241, %s239
          %s243 = smul.addr %s242, 8
          %s244 = scalar_lea.vmem %s3, %s243
        $region36: #{tpu_custom_call.1} parent=19 // pred_fallthru
          _
      $region20: #{tpu_custom_call.1} parent=5 // pred_fallthru
        _
      %p245 = scmp.le.s32.totalorder 1, %s14
      %p246 = scmp.lt.s32.totalorder %s14, 3
      %p247 = pnand %p245, %p246
      %p248 = pneg %p247
      // Predicated region
      $region37: #{tpu_custom_call.1} parent=5 // pred_check
        _
      $region38: #{tpu_custom_call.1} parent=5 // pred_check_branch
        %250 = sbr.rel (%p247) target = $region40
      $region39: #{tpu_custom_call.1} parent=5 // pred_region
        %s251 = ssub.s32 %s14, 1
        %p252 = scmp.lt.s32.totalorder %s23, 1
        %s253 = scalar_select %p252, %s23, 1
        %p254 = scmp.lt.s32.totalorder %s24, 0
        %s255 = scalar_select %p254, %s24, 0
        %s256 = sadd.s32 %s255, %s253
        %s257 = smul.addr %s256, 8
        %s258 = scalar_lea.vmem %s0, %s257
        %p259 = pneg %p54
        %p260 = pneg %p51
        %p261 = scmp.lt.s32.totalorder %s23, 1
        %s262 = scalar_select %p261, %s23, 1
        %s263 = smul.addr %s262, 16
        %s264 = smul.addr %s263, 8
        %s265 = scalar_lea.vmem %s1, %s264
        %p266 = pneg %p80
        %p267 = pneg %p77
        %p268 = scmp.lt.s32.totalorder %s23, 1
        %s269 = scalar_select %p268, %s23, 1
        %p270 = scmp.lt.s32.totalorder %s24, 0
        %s271 = scalar_select %p270, %s24, 0
        %s272 = sadd.s32 %s271, %s269
        %s273 = smul.addr %s272, 8
        %s274 = scalar_lea.vmem %s2, %s273
        %p275 = pneg %p108
        %p276 = pneg %p105
        %p277 = scmp.lt.s32.totalorder %s23, 1
        %s278 = scalar_select %p277, %s23, 1
        %p279 = scmp.lt.s32.totalorder %s24, 0
        %s280 = scalar_select %p279, %s24, 0
        %s281 = sadd.s32 %s280, %s278
        %s282 = smul.addr %s281, 8
        %s283 = scalar_lea.vmem %s3, %s282
        %p284 = pneg %p136
        %p285 = pneg %p133
        %p286 = pneg %p157
        %p287 = pneg %p154
        %p288 = pneg %p185
        %p289 = pneg %p182
        %s290 = sand.u32 %s172, 1
        %s291 = scalar_lea.sflag [#allocation3], %s290
        %s292 = sand.u32 %s172, 1
        %s293 = smul.addr %s292, 8
        %s294 = scalar_lea.vmem [#allocation2], %s293
        %p295 = scmp.lt.s32.totalorder %s23, 1
        %s296 = scalar_select %p295, %s23, 1
        %p297 = scmp.lt.s32.totalorder %s24, 0
        %s298 = scalar_select %p297, %s24, 0
        %s299 = sadd.s32 %s298, %s296
        %s300 = smul.addr %s299, 8
        %s301 = scalar_lea.vmem %s0, %s300
        %p302 = scmp.lt.s32.totalorder %s23, 1
        %s303 = scalar_select %p302, %s23, 1
        %s304 = smul.addr %s303, 16
        %s305 = smul.addr %s304, 8
        %s306 = scalar_lea.vmem %s1, %s305
        %p307 = scmp.lt.s32.totalorder %s23, 1
        %s308 = scalar_select %p307, %s23, 1
        %p309 = scmp.lt.s32.totalorder %s24, 0
        %s310 = scalar_select %p309, %s24, 0
        %s311 = sadd.s32 %s310, %s308
        %s312 = smul.addr %s311, 8
        %s313 = scalar_lea.vmem %s2, %s312
        %p314 = scmp.lt.s32.totalorder %s23, 1
        %s315 = scalar_select %p314, %s23, 1
        %p316 = scmp.lt.s32.totalorder %s24, 0
        %s317 = scalar_select %p316, %s24, 0
        %s318 = sadd.s32 %s317, %s315
        %s319 = smul.addr %s318, 8
        %s320 = scalar_lea.vmem %s3, %s319
        %v321 = vld [vmem:[%s301] sm:$0xff]
        %v322 = vld [vmem:[%s306] sm:$0xff]
        %v323 = vld [vmem:[%s306 + $0x8] sm:$0xff]
        %v324 = vld [vmem:[%s306 + $0x10] sm:$0xff]
        %v325 = vld [vmem:[%s306 + $0x18] sm:$0xff]
        %v326 = vld [vmem:[%s306 + $0x20] sm:$0xff]
        %v327 = vld [vmem:[%s306 + $0x28] sm:$0xff]
        %v328 = vld [vmem:[%s306 + $0x30] sm:$0xff]
        %v329 = vld [vmem:[%s306 + $0x38] sm:$0xff]
        %v330 = vld [vmem:[%s306 + $0x40] sm:$0xff]
        %v331 = vld [vmem:[%s306 + $0x48] sm:$0xff]
        %v332 = vld [vmem:[%s306 + $0x50] sm:$0xff]
        %v333 = vld [vmem:[%s306 + $0x58] sm:$0xff]
        %v334 = vld [vmem:[%s306 + $0x60] sm:$0xff]
        %v335 = vld [vmem:[%s306 + $0x68] sm:$0xff]
        %v336 = vld [vmem:[%s306 + $0x70] sm:$0xff]
        %v337 = vld [vmem:[%s306 + $0x78] sm:$0xff]
        %v338 = vld [vmem:[%s313] sm:$0xff]
        %v339 = vld [vmem:[%s320] sm:$0xff]
        %v340 = vmax.f32 %v339, 0.0
        %v341 = vmin.f32 %v340, 1.0
        %342 = vmatprep.subr.mxu0 0.0
        %343 = vmatpush1.msra.mxu0 %v322
        %344 = vmatprep.subr.mxu0 0.0
        %345 = vmatpush1.msra.mxu0 %v323
        %346 = vmatprep.subr.mxu0 0.0
        %347 = vmatpush1.msra.mxu0 %v324
        %348 = vmatprep.subr.mxu0 0.0
        %349 = vmatpush1.msra.mxu0 %v325
        %350 = vmatprep.subr.mxu0 0.0
        %351 = vmatpush1.msra.mxu0 %v326
        %352 = vmatprep.subr.mxu0 0.0
        %353 = vmatpush1.msra.mxu0 %v327
        %354 = vmatprep.subr.mxu0 0.0
        %355 = vmatpush1.msra.mxu0 %v328
        %356 = vmatprep.subr.mxu0 0.0
        %357 = vmatpush1.msra.mxu0 %v329
        %358 = vmatprep.subr.mxu0 0.0
        %359 = vmatpush1.msra.mxu0 %v330
        %360 = vmatprep.subr.mxu0 0.0
        %361 = vmatpush1.msra.mxu0 %v331
        %362 = vmatprep.subr.mxu0 0.0
        %363 = vmatpush1.msra.mxu0 %v332
        %364 = vmatprep.subr.mxu0 0.0
        %365 = vmatpush1.msra.mxu0 %v333
        %366 = vmatprep.subr.mxu0 0.0
        %367 = vmatpush1.msra.mxu0 %v334
        %368 = vmatprep.subr.mxu0 0.0
        %369 = vmatpush1.msra.mxu0 %v335
        %370 = vmatprep.subr.mxu0 0.0
        %371 = vmatpush1.msra.mxu0 %v336
        %372 = vmatprep.subr.mxu0 0.0
        %373 = vmatpush1.msra.mxu0 %v337
        %374 = vmatprep.subr.mxu0 0.0
        %375 = vmatpush1.msra.mxu0 0.0
        %376 = vmatprep.subr.mxu0 0.0
        %377 = vmatpush1.msra.mxu0 0.0
        %378 = vmatprep.subr.mxu0 0.0
        %379 = vmatpush1.msra.mxu0 0.0
        %380 = vmatprep.subr.mxu0 0.0
        %381 = vmatpush1.msra.mxu0 0.0
        %382 = vmatprep.subr.mxu0 0.0
        %383 = vmatpush1.msra.mxu0 0.0
        %384 = vmatprep.subr.mxu0 0.0
        %385 = vmatpush1.msra.mxu0 0.0
        %386 = vmatprep.subr.mxu0 0.0
        %387 = vmatpush1.msra.mxu0 0.0
        %388 = vmatprep.subr.mxu0 0.0
        %389 = vmatpush1.msra.mxu0 0.0
        %390 = vmatprep.subr.mxu0 0.0
        %391 = vmatpush1.msra.mxu0 0.0
        %392 = vmatprep.subr.mxu0 0.0
        %393 = vmatpush1.msra.mxu0 0.0
        %394 = vmatprep.subr.mxu0 0.0
        %395 = vmatpush1.msra.mxu0 0.0
        %396 = vmatprep.subr.mxu0 0.0
        %397 = vmatpush1.msra.mxu0 0.0
        %398 = vmatprep.subr.mxu0 0.0
        %399 = vmatpush1.msra.mxu0 0.0
        %400 = vmatprep.subr.mxu0 0.0
        %401 = vmatpush1.msra.mxu0 0.0
        %402 = vmatprep.subr.mxu0 0.0
        %403 = vmatpush1.msra.mxu0 0.0
        %404 = vmatprep.subr.mxu0 0.0
        %405 = vmatpush1.msra.mxu0 0.0
        %406 = vmatprep.mubr.f32.mxu0 0.0
        %407 = vmatmul.mubr.f32.gmra.mrb[0].mxu0 %v321
        %v408 = vpop.f32.mrb[0].mxu0
        %v409 = vadd.f32 0.0, %v408
        %v410 = vpop.f32.mrb[0].mxu0
        %411 = vdwg.mxu0
        %v412 = vmul.f32 %v409, 1.442695
        %v413 = vpow.pop %v412
        %v414 = vmul.f32 %v413, %v341
        %v415 = vlaneseq
        %v416 = vand.u32 %v415, 127
        %vm417 = vcmp.eq.s32.totalorder %v338, 0
        %v418 = vsel %vm417, %v414, 0.0
        %vm419 = vcmask 130048
        %v420 = vsel %vm419, %v418, 0.0
        %421 = vadd.xlane.f32.xlu0 %v420
        %v422 = vpop.xlane.xlu0 %421
        %vm423 = vcmp.eq.s32.totalorder %v416, 0
        %v424 = vsel %vm423, 1, 0
        %vm425 = vcmp.eq.s32.totalorder %v424, 1
        %v426 = vsel %vm425, %v422, 0.0
        %vm427 = vcmp.eq.s32.totalorder %v338, 1
        %v428 = vsel %vm427, %v414, 0.0
        %v429 = vsel %vm419, %v428, 0.0
        %430 = vadd.xlane.f32.xlu0 %v429
        %v431 = vpop.xlane.xlu0 %430
        %vm432 = vcmp.eq.s32.totalorder %v416, 1
        %v433 = vsel %vm432, 1, 0
        %vm434 = vcmp.eq.s32.totalorder %v433, 1
        %v435 = vsel %vm434, %v431, %v426
        %vm436 = vcmp.eq.s32.totalorder %v338, 2
        %v437 = vsel %vm436, %v414, 0.0
        %v438 = vsel %vm419, %v437, 0.0
        %439 = vadd.xlane.f32.xlu0 %v438
        %v440 = vpop.xlane.xlu0 %439
        %vm441 = vcmp.eq.s32.totalorder %v416, 2
        %v442 = vsel %vm441, 1, 0
        %vm443 = vcmp.eq.s32.totalorder %v442, 1
        %v444 = vsel %vm443, %v440, %v435
        %vm445 = vcmp.eq.s32.totalorder %v338, 3
        %v446 = vsel %vm445, %v414, 0.0
        %v447 = vsel %vm419, %v446, 0.0
        %448 = vadd.xlane.f32.xlu0 %v447
        %v449 = vpop.xlane.xlu0 %448
        %vm450 = vcmp.eq.s32.totalorder %v416, 3
        %v451 = vsel %vm450, 1, 0
        %vm452 = vcmp.eq.s32.totalorder %v451, 1
        %v453 = vsel %vm452, %v449, %v444
        %vm454 = vcmp.eq.s32.totalorder %v338, 4
        %v455 = vsel %vm454, %v414, 0.0
        %v456 = vsel %vm419, %v455, 0.0
        %457 = vadd.xlane.f32.xlu0 %v456
        %v458 = vpop.xlane.xlu0 %457
        %vm459 = vcmp.eq.s32.totalorder %v416, 4
        %v460 = vsel %vm459, 1, 0
        %vm461 = vcmp.eq.s32.totalorder %v460, 1
        %v462 = vsel %vm461, %v458, %v453
        %vm463 = vcmp.eq.s32.totalorder %v338, 5
        %v464 = vsel %vm463, %v414, 0.0
        %v465 = vsel %vm419, %v464, 0.0
        %466 = vadd.xlane.f32.xlu0 %v465
        %v467 = vpop.xlane.xlu0 %466
        %vm468 = vcmp.eq.s32.totalorder %v416, 5
        %v469 = vsel %vm468, 1, 0
        %vm470 = vcmp.eq.s32.totalorder %v469, 1
        %v471 = vsel %vm470, %v467, %v462
        %vm472 = vcmp.eq.s32.totalorder %v338, 6
        %v473 = vsel %vm472, %v414, 0.0
        %v474 = vsel %vm419, %v473, 0.0
        %475 = vadd.xlane.f32.xlu0 %v474
        %v476 = vpop.xlane.xlu0 %475
        %vm477 = vcmp.eq.s32.totalorder %v416, 6
        %v478 = vsel %vm477, 1, 0
        %vm479 = vcmp.eq.s32.totalorder %v478, 1
        %v480 = vsel %vm479, %v476, %v471
        %vm481 = vcmp.eq.s32.totalorder %v338, 7
        %v482 = vsel %vm481, %v414, 0.0
        %v483 = vsel %vm419, %v482, 0.0
        %484 = vadd.xlane.f32.xlu0 %v483
        %v485 = vpop.xlane.xlu0 %484
        %vm486 = vcmp.eq.s32.totalorder %v416, 7
        %v487 = vsel %vm486, 1, 0
        %vm488 = vcmp.eq.s32.totalorder %v487, 1
        %v489 = vsel %vm488, %v485, %v480
        %vm490 = vcmp.eq.s32.totalorder %v338, 8
        %v491 = vsel %vm490, %v414, 0.0
        %v492 = vsel %vm419, %v491, 0.0
        %493 = vadd.xlane.f32.xlu0 %v492
        %v494 = vpop.xlane.xlu0 %493
        %vm495 = vcmp.eq.s32.totalorder %v416, 8
        %v496 = vsel %vm495, 1, 0
        %vm497 = vcmp.eq.s32.totalorder %v496, 1
        %v498 = vsel %vm497, %v494, %v489
        %vm499 = vcmp.eq.s32.totalorder %v338, 9
        %v500 = vsel %vm499, %v414, 0.0
        %v501 = vsel %vm419, %v500, 0.0
        %502 = vadd.xlane.f32.xlu0 %v501
        %v503 = vpop.xlane.xlu0 %502
        %vm504 = vcmp.eq.s32.totalorder %v416, 9
        %v505 = vsel %vm504, 1, 0
        %vm506 = vcmp.eq.s32.totalorder %v505, 1
        %v507 = vsel %vm506, %v503, %v498
        %v508 = vsel %vm419, %v507, 0.0
        %509 = vadd.xlane.f32.xlu0 %v508
        %v510 = vpop.xlane.xlu0 %509
        %v511 = vadd.f32 %v510, 1e-10
        %v512 = vld [vmem:[%s4] sm:$0xff]
        %v513 = vld [vmem:[%s4 + $0x8] sm:$0xff]
        %v515 = vsel %vm419, %v507, 0
        %517 = vmatprep.subr.mxu0 0.0
        %518 = vmatpush1.msra.mxu0 %v512
        %519 = vmatprep.subr.mxu0 0.0
        %520 = vmatpush1.msra.mxu0 %v513
        %521 = vmatprep.subr.mxu0 0.0
        %522 = vmatpush1.msra.mxu0 0.0
        %523 = vmatprep.subr.mxu0 0.0
        %524 = vmatpush1.msra.mxu0 0.0
        %525 = vmatprep.subr.mxu0 0.0
        %526 = vmatpush1.msra.mxu0 0.0
        %527 = vmatprep.subr.mxu0 0.0
        %528 = vmatpush1.msra.mxu0 0.0
        %529 = vmatprep.subr.mxu0 0.0
        %530 = vmatpush1.msra.mxu0 0.0
        %531 = vmatprep.subr.mxu0 0.0
        %532 = vmatpush1.msra.mxu0 0.0
        %533 = vmatprep.subr.mxu0 0.0
        %534 = vmatpush1.msra.mxu0 0.0
        %535 = vmatprep.subr.mxu0 0.0
        %536 = vmatpush1.msra.mxu0 0.0
        %537 = vmatprep.subr.mxu0 0.0
        %538 = vmatpush1.msra.mxu0 0.0
        %539 = vmatprep.subr.mxu0 0.0
        %540 = vmatpush1.msra.mxu0 0.0
        %541 = vmatprep.subr.mxu0 0.0
        %542 = vmatpush1.msra.mxu0 0.0
        %543 = vmatprep.subr.mxu0 0.0
        %544 = vmatpush1.msra.mxu0 0.0
        %545 = vmatprep.subr.mxu0 0.0
        %546 = vmatpush1.msra.mxu0 0.0
        %547 = vmatprep.subr.mxu0 0.0
        %548 = vmatpush1.msra.mxu0 0.0
        %549 = vmatprep.subr.mxu0 0.0
        %550 = vmatpush1.msra.mxu0 0.0
        %551 = vmatprep.subr.mxu0 0.0
        %552 = vmatpush1.msra.mxu0 0.0
        %553 = vmatprep.subr.mxu0 0.0
        %554 = vmatpush1.msra.mxu0 0.0
        %555 = vmatprep.subr.mxu0 0.0
        %556 = vmatpush1.msra.mxu0 0.0
        %557 = vmatprep.subr.mxu0 0.0
        %558 = vmatpush1.msra.mxu0 0.0
        %559 = vmatprep.subr.mxu0 0.0
        %560 = vmatpush1.msra.mxu0 0.0
        %561 = vmatprep.subr.mxu0 0.0
        %562 = vmatpush1.msra.mxu0 0.0
        %563 = vmatprep.subr.mxu0 0.0
        %564 = vmatpush1.msra.mxu0 0.0
        %565 = vmatprep.subr.mxu0 0.0
        %566 = vmatpush1.msra.mxu0 0.0
        %567 = vmatprep.subr.mxu0 0.0
        %568 = vmatpush1.msra.mxu0 0.0
        %569 = vmatprep.subr.mxu0 0.0
        %570 = vmatpush1.msra.mxu0 0.0
        %571 = vmatprep.subr.mxu0 0.0
        %572 = vmatpush1.msra.mxu0 0.0
        %573 = vmatprep.subr.mxu0 0.0
        %574 = vmatpush1.msra.mxu0 0.0
        %575 = vmatprep.subr.mxu0 0.0
        %576 = vmatpush1.msra.mxu0 0.0
        %577 = vmatprep.subr.mxu0 0.0
        %578 = vmatpush1.msra.mxu0 0.0
        %579 = vmatprep.subr.mxu0 0.0
        %580 = vmatpush1.msra.mxu0 0.0
        %581 = vmatprep.mubr.f32.mxu0 0.0
        %582 = vmatmul.mubr.f32.gmra.mrb[0].mxu0 %v515
        %v583 = vpop.f32.mrb[0].mxu0
        %v584 = vadd.f32 0.0, %v583
        %v585 = vpop.f32.mrb[0].mxu0
        %586 = vdwg.mxu0
        %v587 = vrcp.pop %v511
        %v588 = vmul.f32 %v584, %v587
        %589 = vst [vmem:[%s294] sm:$0xff] %v588
        %s590 = sand.u32 %s172, 1
        %s591 = scalar_lea.sflag [#allocation3], %s590
        %s592 = sand.u32 %s172, 1
        %s593 = smul.addr %s592, 8
        %s594 = scalar_lea.vmem [#allocation2], %s593
        // Predicated region
        $region41: #{tpu_custom_call.1} parent=39 // pred_check
          %p595 = pneg %p182
        $region42: #{tpu_custom_call.1} parent=39 // pred_check_branch
          %597 = sbr.rel (%p595) target = $region44
        $region43: #{tpu_custom_call.1} parent=39 // pred_region
          %s599 = ssub.s32 128, 128
          %600 = vsyncadd %s591, %s599
          %s601 = sadd.s32 %s24, %s23
          %s602 = smul.addr %s601, 128
          %s603 = scalar_lea.hbm %s5, %s602
          %s605 = sshll.u32 %s594, 4
          %s606 = int_to_ptr.vmem [resolvable:$true] %s605
          %608 = dma.vmem_to_hbm [thread:$0]  %s606, 128, %s603, %s591
        $region44: #{tpu_custom_call.1} parent=39 // pred_fallthru
          _
      $region40: #{tpu_custom_call.1} parent=5 // pred_fallthru
        _
      %p609 = scmp.le.s32.totalorder 2, %s14
      // Predicated region
      $region45: #{tpu_custom_call.1} parent=5 // pred_check
        %p610 = pneg %p609
      $region46: #{tpu_custom_call.1} parent=5 // pred_check_branch
        %612 = sbr.rel (%p610) target = $region48
      $region47: #{tpu_custom_call.1} parent=5 // pred_region
        %s613 = ssub.s32 %s14, 2
        // Predicated region
        $region49: #{tpu_custom_call.1} parent=47 // pred_check
          %p614 = pneg %p188
        $region50: #{tpu_custom_call.1} parent=47 // pred_check_branch
          %616 = sbr.rel (%p614) target = $region52
        $region51: #{tpu_custom_call.1} parent=47 // pred_region
          %s617 = sand.u32 %s173, 1
          %s618 = scalar_lea.sflag [#allocation3], %s617
          %s619 = sand.u32 %s173, 1
          %s620 = smul.addr %s619, 8
          %s621 = scalar_lea.vmem [#allocation2], %s620
          %622 = dma.done %s618, 128
        $region52: #{tpu_custom_call.1} parent=47 // pred_fallthru
          _
      $region48: #{tpu_custom_call.1} parent=5 // pred_fallthru
        _
    $region6: #{tpu_custom_call.1} parent=1 // loop_footer
      %s18 = sadd.s32 1, %s14
    $region7: #{tpu_custom_call.1} parent=1 // loop_footer_branch
      %13 = sbr.rel target = $region3
    $region8: #{tpu_custom_call.1} parent=1 // loop_exit
      _
    %623 = vsyncpa [#allocation3], 1
    %s624 = scalar_lea.sflag [#allocation3], 1
    %625 = vsyncpa %s624, 1

</llo_original>
